<compile_context>
chip_gen: v7x
topology: tpu7x:2x2x1
jax: 0.10.0
libtpu: 0.0.40
codegen_flags: <defaults>
</compile_context>

<pallas_src>
import functools
import math

import numpy as np
import jax
import jax.numpy as jnp
from jax import lax
from jax.experimental import pallas as pl
from jax.experimental.pallas import tpu as pltpu


# ----------------------------------------------------------------------------
# Deterministic parameter construction (mirrors the PyTorch __init__).
# ----------------------------------------------------------------------------
def make_cascade_weights(kernel_size: int, sigma: float) -> np.ndarray:
    """Returns (3, K, K) float32 normalized Gaussian kernels (cascade 0.5/1/2)."""
    cascade_coefficients = [0.5, 1.0, 2.0]
    ksizes = [kernel_size, kernel_size]
    mg = np.meshgrid(
        np.arange(kernel_size, dtype=np.float32),
        np.arange(kernel_size, dtype=np.float32),
        indexing="ij",
    )
    kernels = []
    for coeff in cascade_coefficients:
        stds = [coeff * sigma, coeff * sigma]
        kernel = np.ones((kernel_size, kernel_size), dtype=np.float32)
        for size_1d, std_1d, mgrid in zip(ksizes, stds, mg):
            mean = (size_1d - 1) / 2.0
            kernel = kernel * (
                1.0 / (std_1d * math.sqrt(2.0 * math.pi))
                * np.exp(-(((mgrid - mean) / std_1d) ** 2) / 2.0)
            )
        kernel = kernel / kernel.sum()
        kernels.append(kernel.astype(np.float32))
    return np.stack(kernels, axis=0)  # (3, K, K)


@functools.lru_cache(maxsize=None)
def _tap_groups(kernel_size: int, sigma: float):
    """Pre-summed cascade taps grouped by (exactly) equal weight.

    conv is linear, so conv(x,w1)+conv(x,w2)+conv(x,w3) == conv(x, w1+w2+w3).
    The summed kernel has full dihedral symmetry (mirror / transpose entries
    are bit-identical by construction), so taps sharing a weight share one
    multiply: pre-add their shifted windows, then one MAC per unique weight.
    """
    w = make_cascade_weights(kernel_size, float(sigma)).sum(axis=0)  # (K, K)
    groups = {}
    for dy in range(kernel_size):
        for dx in range(kernel_size):
            groups.setdefault(float(w[dy, dx]), []).append((dy, dx))
    return tuple((val, tuple(pos)) for val, pos in groups.items())


def _round_up(x: int, m: int) -> int:
    return ((x + m - 1) // m) * m


@functools.lru_cache(maxsize=None)
def _tpu_budget():
    """(physical per-core VMEM bytes, assumed TensorCores sharing the grid)."""
    vmem = 64 * 2**20
    try:
        info = pltpu.get_tpu_info()
        vmem = int(getattr(info, "vmem_capacity_bytes", vmem))
    except Exception:
        pass
    # v7x-class parts are the ones with 64 MiB/TC and 2 TCs; v5e/v6e: 128 MiB, 1 TC.
    num_cores = 2 if vmem <= 64 * 2**20 else 1
    return vmem, num_cores


def _pick_cb(nc: int, per_channel_bytes: int, budget_bytes: int, num_cores: int) -> int:
    """Channels per grid block.

    Single-TC parts: largest divisor of nc that fits the VMEM block budget.
    Multi-TC (v7x) parts: additionally prefer a step count that is a multiple
    of num_cores and >= 2 steps per core (balanced + pipelined).
    """
    max_cb = max(1, budget_bytes // max(per_channel_bytes, 1))
    divisors = [d for d in range(1, nc + 1) if nc % d == 0 and d <= max_cb]
    if not divisors:
        divisors = [1]
    if num_cores > 1:
        good = [d for d in divisors
                if (nc // d) % num_cores == 0 and (nc // d) >= 2 * num_cores]
        ok = [d for d in divisors if (nc // d) % num_cores == 0]
        if good:
            return max(good)
        if ok:
            return max(ok)
    return max(divisors)


def _pick_strip_rows(h: int, cb: int, wo: int, target_bytes: int = 40 * 1024) -> int:
    """Output rows per accumulation strip (~8-12 vregs of accumulator)."""
    rows = target_bytes // max(cb * wo * 4, 1)
    rows = max(8, (rows // 8) * 8)
    return min(h, rows)


# ----------------------------------------------------------------------------
# Pallas kernel: (Cb, Hp, Wq) padded channel block -> (Cb, H, Wo) output block.
# ----------------------------------------------------------------------------
def _cascade_smooth_kernel(xp_ref, o_ref, *, tap_groups, K, H, Wo, Wq, SH):
    # xp_ref: VMEM (Cb, Hp, Wq)  -- reflect-padded slab, lane-padded to Wq%128==0
    # o_ref : VMEM (Cb, H,  Wo)  -- lane-dense output (cropped to W by wrapper)
    Cb = o_ref.shape[0]

    def strip(h0, sh):
        # One aligned band load per strip, covering all dy rows of the strip.
        band = xp_ref[:, pl.ds(h0, sh + K - 1), :].astype(jnp.float32)  # (Cb, sh+K-1, Wq)
        # Hoisted dx lane-shifts: K-1 XLU rolls per strip, reused by every dy.
        rolled = [band]
        for dx in range(1, K):
            rolled.append(pltpu.roll(band, shift=(Wq - dx) % Wq, axis=2))

        acc = None
        for w, positions in tap_groups:
            comb = None
            for (dy, dx) in positions:
                win = rolled[dx][:, dy:dy + sh, :Wo]
                comb = win if comb is None else comb + win
            term = w * comb                       # one multiply per unique weight
            acc = term if acc is None else acc + term
        o_ref[:, pl.ds(h0, sh), :] = acc.astype(o_ref.dtype)

    n_full = H // SH
    rem = H - n_full * SH
    if n_full <= 4:
        for s in range(n_full):                   # static unroll for short counts
            strip(s * SH, SH)
    else:
        def body(s, carry):
            h0 = pl.multiple_of(s * SH, 8)        # SH is a multiple of 8 here
            strip(h0, SH)
            return carry
        lax.fori_loop(0, n_full, body, 0, unroll=2)
    if rem:
        # Remainder strip: sublane-masked load/store; correct, slightly slower.
        strip(n_full * SH, rem)


# ----------------------------------------------------------------------------
# Wrapper (glue: reflect pad, lane pad, channel packing, pallas_call, crop).
# ----------------------------------------------------------------------------
def cascade_gaussian_smoothing(x, kernel_size: int, sigma: float):
    """x: (N, C, H, W) float32, NCHW.  Returns (N, C, H, W)."""
    if kernel_size % 2 != 1:
        raise ValueError("kernel_size must be odd to preserve the HxW shape")
    N, C, H, W = x.shape
    K = kernel_size
    pad = K // 2

    tap_groups = _tap_groups(K, float(sigma))   # cached; baked as constants

    Hp = H + 2 * pad
    Wp = W + 2 * pad
    Wq = _round_up(Wp, 128)   # lane-dense input slab width
    Wo = _round_up(W, 128)    # lane-dense output slab width (cropped at the end)
    extra = Wq - Wp

    # F.pad(..., mode='reflect') == jnp.pad(mode='reflect').  When the image is
    # wide enough, the conv halo and the lane padding are merged into ONE pad
    # pass (extra reflected columns land at >= Wp and are never read for
    # output columns < W).
    x3 = x.reshape(N * C, H, W)
    if pad + extra < W:
        xp = jnp.pad(x3, ((0, 0), (pad, pad), (pad, pad + extra)), mode="reflect")
    else:
        xp = jnp.pad(x3, ((0, 0), (pad, pad), (pad, pad)), mode="reflect")
        if extra:
            xp = jnp.pad(xp, ((0, 0), (0, 0), (0, extra)))  # zero lanes, unused

    NC = N * C
    itemsize = jnp.dtype(x.dtype).itemsize
    per_channel_bytes = (Hp * Wq + H * Wo) * itemsize

    vmem_cap, num_cores = _tpu_budget()
    if vmem_cap <= 64 * 2**20:          # v7x-class: 64 MiB physical per TC
        vmem_limit_cap = 48 * 2**20
        block_budget = 12 * 2**20
    else:                               # v5e / v6e: 128 MiB physical
        vmem_limit_cap = 100 * 2**20
        block_budget = 20 * 2**20

    Cb = _pick_cb(NC, per_channel_bytes, block_budget, num_cores)
    SH = _pick_strip_rows(H, Cb, Wo)

    block_bytes = Cb * per_channel_bytes
    vmem_limit = int(min(vmem_limit_cap, max(32 * 2**20, 3 * block_bytes)))

    kernel = functools.partial(
        _cascade_smooth_kernel,
        tap_groups=tap_groups, K=K, H=H, Wo=Wo, Wq=Wq, SH=SH,
    )

    out = pl.pallas_call(
        kernel,
        out_shape=jax.ShapeDtypeStruct((NC, H, Wo), x.dtype),
        grid=(NC // Cb,),
        in_specs=[pl.BlockSpec((Cb, Hp, Wq), lambda i: (i, 0, 0))],
        out_specs=pl.BlockSpec((Cb, H, Wo), lambda i: (i, 0, 0)),
        compiler_params=pltpu.CompilerParams(
            dimension_semantics=("parallel",),
            vmem_limit_bytes=vmem_limit,
        ),
    )(xp)

    return out[:, :, :W].reshape(N, C, H, W)


# ----------------------------------------------------------------------------
# Pure-JAX reference (three separate accumulators, as in the PyTorch module).
# ----------------------------------------------------------------------------
def cascade_gaussian_smoothing_ref(x, kernel_size: int, sigma: float):
    N, C, H, W = x.shape
    pad = int(kernel_size / 2)
    K = kernel_size
    w = jnp.asarray(make_cascade_weights(kernel_size, sigma))  # (3, K, K)
    xp = jnp.pad(x, ((0, 0), (0, 0), (pad, pad), (pad, pad)), mode="reflect")
    out = jnp.zeros((N, C, H, W), dtype=jnp.float32)
    for c in range(3):
        acc = jnp.zeros((N, C, H, W), dtype=jnp.float32)
        for dy in range(K):
            for dx in range(K):
                acc = acc + w[c, dy, dx] * xp[:, :, dy:dy + H, dx:dx + W]
        out = out + acc
    return out.astype(x.dtype)


if __name__ == "__main__":
    key = jax.random.PRNGKey(0)
    # grayscale=False path -> 3 channels (depthwise, groups=3)
    N, C, H, W = 2, 3, 16, 16
    kernel_size, sigma = 5, 1.0

    x = jax.random.normal(key, (N, C, H, W), dtype=jnp.float32)

    out = cascade_gaussian_smoothing(x, kernel_size, sigma)
    out = jax.block_until_ready(out)

    ref = jax.block_until_ready(cascade_gaussian_smoothing_ref(x, kernel_size, sigma))
    assert out.shape == (N, C, H, W)
    assert np.allclose(np.asarray(out), np.asarray(ref), rtol=1e-4, atol=1e-5)

    print("KERNEL_OK")
</pallas_src>

<mosaic_0001>
module attributes {stable_mosaic.version = 11 : i64} {
  func.func @_cascade_smooth_kernel(%arg0: i32, %arg1: memref<1x20x128xf32, #tpu.memory_space<vmem>>, %arg2: memref<1x16x128xf32, #tpu.memory_space<vmem>>) attributes {dimension_semantics = [#tpu.dimension_semantics<parallel>], iteration_bounds = array<i64: 6>, scalar_prefetch = 0 : i64, scratch_operands = 0 : i64, tpu.core_type = #tpu.core_type<tc>, window_params = [{transform_indices = @transform_0, window_bounds = array<i64: 1, 20, 128>}, {transform_indices = @transform_1, window_bounds = array<i64: 1, 16, 128>}]} {
    %c0 = arith.constant 0 : index
    %c0_0 = arith.constant 0 : index
    %c0_1 = arith.constant 0 : index
    %0 = vector.load %arg1[%c0, %c0_0, %c0_1] : memref<1x20x128xf32, #tpu.memory_space<vmem>>, vector<1x20x128xf32>
    %c127_i32 = arith.constant 127 : i32
    %1 = tpu.dynamic_rotate %0 by %c127_i32 dim 2 : vector<1x20x128xf32>, i32 -> vector<1x20x128xf32>
    %c126_i32 = arith.constant 126 : i32
    %2 = tpu.dynamic_rotate %0 by %c126_i32 dim 2 : vector<1x20x128xf32>, i32 -> vector<1x20x128xf32>
    %c125_i32 = arith.constant 125 : i32
    %3 = tpu.dynamic_rotate %0 by %c125_i32 dim 2 : vector<1x20x128xf32>, i32 -> vector<1x20x128xf32>
    %c124_i32 = arith.constant 124 : i32
    %4 = tpu.dynamic_rotate %0 by %c124_i32 dim 2 : vector<1x20x128xf32>, i32 -> vector<1x20x128xf32>
    %5 = vector.extract_strided_slice %0 {offsets = [0, 0, 0], sizes = [1, 16, 128], strides = [1, 1, 1]} : vector<1x20x128xf32> to vector<1x16x128xf32>
    %6 = vector.extract_strided_slice %4 {offsets = [0, 0, 0], sizes = [1, 16, 128], strides = [1, 1, 1]} : vector<1x20x128xf32> to vector<1x16x128xf32>
    %7 = arith.addf %5, %6 : vector<1x16x128xf32>
    %8 = vector.extract_strided_slice %0 {offsets = [0, 4, 0], sizes = [1, 16, 128], strides = [1, 1, 1]} : vector<1x20x128xf32> to vector<1x16x128xf32>
    %9 = arith.addf %7, %8 : vector<1x16x128xf32>
    %10 = vector.extract_strided_slice %4 {offsets = [0, 4, 0], sizes = [1, 16, 128], strides = [1, 1, 1]} : vector<1x20x128xf32> to vector<1x16x128xf32>
    %11 = arith.addf %9, %10 : vector<1x16x128xf32>
    %cst = arith.constant 0.0262159277 : f32
    %12 = vector.broadcast %cst : f32 to vector<1x16x128xf32>
    %13 = arith.mulf %12, %11 : vector<1x16x128xf32>
    %14 = vector.extract_strided_slice %1 {offsets = [0, 0, 0], sizes = [1, 16, 128], strides = [1, 1, 1]} : vector<1x20x128xf32> to vector<1x16x128xf32>
    %15 = vector.extract_strided_slice %3 {offsets = [0, 0, 0], sizes = [1, 16, 128], strides = [1, 1, 1]} : vector<1x20x128xf32> to vector<1x16x128xf32>
    %16 = arith.addf %14, %15 : vector<1x16x128xf32>
    %17 = vector.extract_strided_slice %0 {offsets = [0, 1, 0], sizes = [1, 16, 128], strides = [1, 1, 1]} : vector<1x20x128xf32> to vector<1x16x128xf32>
    %18 = arith.addf %16, %17 : vector<1x16x128xf32>
    %19 = vector.extract_strided_slice %4 {offsets = [0, 1, 0], sizes = [1, 16, 128], strides = [1, 1, 1]} : vector<1x20x128xf32> to vector<1x16x128xf32>
    %20 = arith.addf %18, %19 : vector<1x16x128xf32>
    %21 = vector.extract_strided_slice %0 {offsets = [0, 3, 0], sizes = [1, 16, 128], strides = [1, 1, 1]} : vector<1x20x128xf32> to vector<1x16x128xf32>
    %22 = arith.addf %20, %21 : vector<1x16x128xf32>
    %23 = vector.extract_strided_slice %4 {offsets = [0, 3, 0], sizes = [1, 16, 128], strides = [1, 1, 1]} : vector<1x20x128xf32> to vector<1x16x128xf32>
    %24 = arith.addf %22, %23 : vector<1x16x128xf32>
    %25 = vector.extract_strided_slice %1 {offsets = [0, 4, 0], sizes = [1, 16, 128], strides = [1, 1, 1]} : vector<1x20x128xf32> to vector<1x16x128xf32>
    %26 = arith.addf %24, %25 : vector<1x16x128xf32>
    %27 = vector.extract_strided_slice %3 {offsets = [0, 4, 0], sizes = [1, 16, 128], strides = [1, 1, 1]} : vector<1x20x128xf32> to vector<1x16x128xf32>
    %28 = arith.addf %26, %27 : vector<1x16x128xf32>
    %cst_2 = arith.constant 0.0471582487 : f32
    %29 = vector.broadcast %cst_2 : f32 to vector<1x16x128xf32>
    %30 = arith.mulf %29, %28 : vector<1x16x128xf32>
    %31 = arith.addf %13, %30 : vector<1x16x128xf32>
    %32 = vector.extract_strided_slice %2 {offsets = [0, 0, 0], sizes = [1, 16, 128], strides = [1, 1, 1]} : vector<1x20x128xf32> to vector<1x16x128xf32>
    %33 = vector.extract_strided_slice %0 {offsets = [0, 2, 0], sizes = [1, 16, 128], strides = [1, 1, 1]} : vector<1x20x128xf32> to vector<1x16x128xf32>
    %34 = arith.addf %32, %33 : vector<1x16x128xf32>
    %35 = vector.extract_strided_slice %4 {offsets = [0, 2, 0], sizes = [1, 16, 128], strides = [1, 1, 1]} : vector<1x20x128xf32> to vector<1x16x128xf32>
    %36 = arith.addf %34, %35 : vector<1x16x128xf32>
    %37 = vector.extract_strided_slice %2 {offsets = [0, 4, 0], sizes = [1, 16, 128], strides = [1, 1, 1]} : vector<1x20x128xf32> to vector<1x16x128xf32>
    %38 = arith.addf %36, %37 : vector<1x16x128xf32>
    %cst_3 = arith.constant 0.0604733378 : f32
    %39 = vector.broadcast %cst_3 : f32 to vector<1x16x128xf32>
    %40 = arith.mulf %39, %38 : vector<1x16x128xf32>
    %41 = arith.addf %31, %40 : vector<1x16x128xf32>
    %42 = vector.extract_strided_slice %1 {offsets = [0, 1, 0], sizes = [1, 16, 128], strides = [1, 1, 1]} : vector<1x20x128xf32> to vector<1x16x128xf32>
    %43 = vector.extract_strided_slice %3 {offsets = [0, 1, 0], sizes = [1, 16, 128], strides = [1, 1, 1]} : vector<1x20x128xf32> to vector<1x16x128xf32>
    %44 = arith.addf %42, %43 : vector<1x16x128xf32>
    %45 = vector.extract_strided_slice %1 {offsets = [0, 3, 0], sizes = [1, 16, 128], strides = [1, 1, 1]} : vector<1x20x128xf32> to vector<1x16x128xf32>
    %46 = arith.addf %44, %45 : vector<1x16x128xf32>
    %47 = vector.extract_strided_slice %3 {offsets = [0, 3, 0], sizes = [1, 16, 128], strides = [1, 1, 1]} : vector<1x20x128xf32> to vector<1x16x128xf32>
    %48 = arith.addf %46, %47 : vector<1x16x128xf32>
    %cst_4 = arith.constant 0.120179623 : f32
    %49 = vector.broadcast %cst_4 : f32 to vector<1x16x128xf32>
    %50 = arith.mulf %49, %48 : vector<1x16x128xf32>
    %51 = arith.addf %41, %50 : vector<1x16x128xf32>
    %52 = vector.extract_strided_slice %2 {offsets = [0, 1, 0], sizes = [1, 16, 128], strides = [1, 1, 1]} : vector<1x20x128xf32> to vector<1x16x128xf32>
    %53 = vector.extract_strided_slice %1 {offsets = [0, 2, 0], sizes = [1, 16, 128], strides = [1, 1, 1]} : vector<1x20x128xf32> to vector<1x16x128xf32>
    %54 = arith.addf %52, %53 : vector<1x16x128xf32>
    %55 = vector.extract_strided_slice %3 {offsets = [0, 2, 0], sizes = [1, 16, 128], strides = [1, 1, 1]} : vector<1x20x128xf32> to vector<1x16x128xf32>
    %56 = arith.addf %54, %55 : vector<1x16x128xf32>
    %57 = vector.extract_strided_slice %2 {offsets = [0, 3, 0], sizes = [1, 16, 128], strides = [1, 1, 1]} : vector<1x20x128xf32> to vector<1x16x128xf32>
    %58 = arith.addf %56, %57 : vector<1x16x128xf32>
    %cst_5 = arith.constant 0.23781766 : f32
    %59 = vector.broadcast %cst_5 : f32 to vector<1x16x128xf32>
    %60 = arith.mulf %59, %58 : vector<1x16x128xf32>
    %61 = arith.addf %51, %60 : vector<1x16x128xf32>
    %62 = vector.extract_strided_slice %2 {offsets = [0, 2, 0], sizes = [1, 16, 128], strides = [1, 1, 1]} : vector<1x20x128xf32> to vector<1x16x128xf32>
    %cst_6 = arith.constant 0.843987822 : f32
    %63 = vector.broadcast %cst_6 : f32 to vector<1x16x128xf32>
    %64 = arith.mulf %63, %62 : vector<1x16x128xf32>
    %65 = arith.addf %61, %64 : vector<1x16x128xf32>
    %c0_7 = arith.constant 0 : index
    %c0_8 = arith.constant 0 : index
    %c0_9 = arith.constant 0 : index
    %66 = vector.load %arg2[%c0_7, %c0_8, %c0_9] : memref<1x16x128xf32, #tpu.memory_space<vmem>>, vector<1x16x128xf32>
    tpu.vector_store %arg2[%c0_7, %c0_8, %c0_9], %65 {strides = array<i32>} : memref<1x16x128xf32, #tpu.memory_space<vmem>>, vector<1x16x128xf32>,
    return
  }
  func.func @transform_0(%arg0: i32) -> (i32, i32, i32) {
    %c0_i32 = arith.constant 0 : i32
    %c0_i32_0 = arith.constant 0 : i32
    %c0_i32_1 = arith.constant 0 : i32
    return %arg0, %c0_i32, %c0_i32_0 : i32, i32, i32
  }
  func.func @transform_1(%arg0: i32) -> (i32, i32, i32) {
    %c0_i32 = arith.constant 0 : i32
    %c0_i32_0 = arith.constant 0 : i32
    %c0_i32_1 = arith.constant 0 : i32
    return %arg0, %c0_i32, %c0_i32_0 : i32, i32, i32
  }
}

</mosaic_0001>

<llo_original>
// kernel: tpu_custom_call.1
$region0: #{tpu_custom_call.1}
  #allocation0 [shape = 'u32[]', space=smem, size = 0x4, offset = 0x4, fixed_abs, tag = 'smem constant byte address 0x4 - core index']
  #allocation1 [shape = 'u32[144,128]{1,0:T(1,128)}', space=vmem, size = 0x12000, scoped, tag = 'internal scratch']
  %s0 = inlined_call_operand.hbm [shape: f32[6,20,128], index: 0, kind: input, shape index: {}]
  %s1 = inlined_call_operand.hbm [shape: f32[6,16,128], index: 1, kind: output, shape index: {}]
  %s2 = sld [smem:[#allocation0]]
  $region41: #{tpu_custom_call.1} parent=0
    _
  %s4 = ssub.s32 1, %s2
  %s5 = scalar_select 0, %s4, %s2
  $region1: #{tpu_custom_call.1} parent=0
    #allocation2 [shape = 'u8[24576]{0}', space=vmem, size = 0x6000, scoped, tag = 'input window, operand 0']
    #allocation3 [shape = 's32[2]{0}', space=sflag, size = 0x8, scoped, tag = 'scoped memory for tpu_custom_call.1']
    #allocation4 [shape = 's32[2]{0}', space=sflag, size = 0x8, scoped, tag = 'scoped memory for tpu_custom_call.1']
    #allocation5 [shape = 'u8[16384]{0}', space=vmem, size = 0x4000, scoped, tag = 'output window, operand 0']
    %6 = vsyncpa [#allocation3], 0
    %s7 = scalar_lea.sflag [#allocation3], 1
    %8 = vsyncpa %s7, 0
    %9 = vsyncpa [#allocation4], 0
    %s10 = scalar_lea.sflag [#allocation4], 1
    %11 = vsyncpa %s10, 0
    loop: start=0, step=1, limit=8
    $region2: #{tpu_custom_call.1} parent=1 // loop_pre_header
      _
    $region3: #{tpu_custom_call.1} parent=1 // loop_header
      %s13 = sphi 0, %s17
      %p14 = scmp.ge.s32.totalorder %s13, 8
      %s23 = sphi 0, %s25
      %s26 = sphi 0, %s23
      %s27 = sphi 0, %s26
      %s43 = sphi 0, %s27
      %s49 = sphi 0, %s51
      %s52 = sphi 0, %s49
      %s53 = sphi 0, %s52
      %s69 = sphi 0, %s53
    $region4: #{tpu_custom_call.1} parent=1 // loop_header_branch
      %16 = sbr.rel (%p14) target = $region8
    $region5: #{tpu_custom_call.1} parent=1 // loop_body
      %s18 = ssub.s32 %s13, 1
      %s19 = ssub.s32 %s13, 2
      %s20 = sadd.s32 %s13, 1
      %s21 = ssub.s32 %s13, %s20
      %p22 = scmp.eq.s32.totalorder %s21, 0
      %s24 = sadd.s32 %s23, 1
      %s25 = scalar_select %p22, %s23, %s24
      %p28 = pneg %p22
      %p29 = scmp.eq.s32.totalorder %s13, 5
      %p30 = por %p28, %p29
      %p31 = scmp.ne.s32.totalorder %s23, %s26
      %p32 = scmp.eq.s32.totalorder %s13, 0
      %p33 = por %p31, %p32
      %p34 = scmp.ne.s32.totalorder %s23, %s26
      %p35 = scmp.eq.s32.totalorder %s18, 5
      %p36 = por %p34, %p35
      %p37 = scmp.ne.s32.totalorder %s26, %s27
      %p38 = scmp.eq.s32.totalorder %s18, 0
      %p39 = por %p37, %p38
      %p40 = scmp.ne.s32.totalorder %s26, %s27
      %p41 = scmp.eq.s32.totalorder %s19, 5
      %p42 = por %p40, %p41
      %p44 = scmp.ne.s32.totalorder %s27, %s43
      %p45 = scmp.eq.s32.totalorder %s19, 0
      %p46 = por %p44, %p45
      %s47 = ssub.s32 %s13, %s20
      %p48 = scmp.eq.s32.totalorder %s47, 0
      %s50 = sadd.s32 %s49, 1
      %s51 = scalar_select %p48, %s49, %s50
      %p54 = pneg %p48
      %p55 = scmp.eq.s32.totalorder %s13, 5
      %p56 = por %p54, %p55
      %p57 = scmp.ne.s32.totalorder %s49, %s52
      %p58 = scmp.eq.s32.totalorder %s13, 0
      %p59 = por %p57, %p58
      %p60 = scmp.ne.s32.totalorder %s49, %s52
      %p61 = scmp.eq.s32.totalorder %s18, 5
      %p62 = por %p60, %p61
      %p63 = scmp.ne.s32.totalorder %s52, %s53
      %p64 = scmp.eq.s32.totalorder %s18, 0
      %p65 = por %p63, %p64
      %p66 = scmp.ne.s32.totalorder %s52, %s53
      %p67 = scmp.eq.s32.totalorder %s19, 5
      %p68 = por %p66, %p67
      %p70 = scmp.ne.s32.totalorder %s53, %s69
      %p71 = scmp.eq.s32.totalorder %s19, 0
      %p72 = por %p70, %p71
      %p73 = scmp.le.s32.totalorder 1, %s13
      %p74 = scmp.lt.s32.totalorder %s13, 7
      %p75 = pnand %p73, %p74
      %p76 = pneg %p75
      // Predicated region
      $region9: #{tpu_custom_call.1} parent=5 // pred_check
        _
      $region10: #{tpu_custom_call.1} parent=5 // pred_check_branch
        %78 = sbr.rel (%p75) target = $region12
      $region11: #{tpu_custom_call.1} parent=5 // pred_region
        %s79 = ssub.s32 %s13, 1
      $region12: #{tpu_custom_call.1} parent=5 // pred_fallthru
        _
      %p80 = scmp.lt.s32.totalorder %s13, 6
      // Predicated region
      $region13: #{tpu_custom_call.1} parent=5 // pred_check
        %p81 = pneg %p80
      $region14: #{tpu_custom_call.1} parent=5 // pred_check_branch
        %83 = sbr.rel (%p81) target = $region16
      $region15: #{tpu_custom_call.1} parent=5 // pred_region
        // Predicated region
        $region17: #{tpu_custom_call.1} parent=15 // pred_check
          %p84 = pneg %p33
        $region18: #{tpu_custom_call.1} parent=15 // pred_check_branch
          %86 = sbr.rel (%p84) target = $region20
        $region19: #{tpu_custom_call.1} parent=15 // pred_region
          %s87 = sand.u32 %s23, 1
          %s88 = scalar_lea.sflag [#allocation3], %s87
          %s89 = sand.u32 %s23, 1
          %s90 = smul.addr %s89, 24
          %s91 = scalar_lea.vmem [#allocation2], %s90
          %s93 = ssub.s32 384, 384
          %94 = vsyncadd %s88, %s93
          %s95 = smul.addr %s13, 3
          %s96 = smul.addr %s95, 128
          %s97 = scalar_lea.hbm %s0, %s96
          %s98 = sshll.u32 %s91, 4
          %s99 = int_to_ptr.vmem [resolvable:$true] %s98
          %104 = dma.hbm_to_vmem [thread:$0]  %s97, 384, %s99, %s88, 128, 128, 8
        $region20: #{tpu_custom_call.1} parent=15 // pred_fallthru
          _
      $region16: #{tpu_custom_call.1} parent=5 // pred_fallthru
        _
      %p105 = scmp.le.s32.totalorder 1, %s13
      %p106 = scmp.lt.s32.totalorder %s13, 7
      %p107 = pnand %p105, %p106
      %p108 = pneg %p107
      // Predicated region
      $region21: #{tpu_custom_call.1} parent=5 // pred_check
        _
      $region22: #{tpu_custom_call.1} parent=5 // pred_check_branch
        %110 = sbr.rel (%p107) target = $region24
      $region23: #{tpu_custom_call.1} parent=5 // pred_region
        %s111 = ssub.s32 %s13, 1
        %s112 = sand.u32 %s26, 1
        %s113 = scalar_lea.sflag [#allocation3], %s112
        %s114 = sand.u32 %s26, 1
        %s115 = smul.addr %s114, 24
        %s116 = scalar_lea.vmem [#allocation2], %s115
        // Predicated region
        $region25: #{tpu_custom_call.1} parent=23 // pred_check
          %p117 = pneg %p39
        $region26: #{tpu_custom_call.1} parent=23 // pred_check_branch
          %119 = sbr.rel (%p117) target = $region28
        $region27: #{tpu_custom_call.1} parent=23 // pred_region
          %120 = dma.done %s113, 384
        $region28: #{tpu_custom_call.1} parent=23 // pred_fallthru
          _
        %s121 = sand.u32 %s26, 1
        %s122 = scalar_lea.sflag [#allocation3], %s121
        %s123 = sand.u32 %s26, 1
        %s124 = smul.addr %s123, 24
        %s125 = scalar_lea.vmem [#allocation2], %s124
        %p126 = pneg %p39
        %p127 = pneg %p36
        %p128 = pneg %p65
        %p129 = pneg %p62
        %s130 = sand.u32 %s52, 1
        %s131 = scalar_lea.sflag [#allocation4], %s130
        %s132 = sand.u32 %s52, 1
        %s133 = smul.addr %s132, 16
        %s134 = scalar_lea.vmem [#allocation5], %s133
        %v135 = vld [vmem:[%s116] sm:$0xff]
        %v136 = vld [vmem:[%s116 + $0x8] sm:$0xff]
        %v137 = vld [vmem:[%s116 + $0x10] sm:$0xf]
        %138 = vrot.lane.b32.xlu0 %v135, 127
        %v139 = vpop.permute.xlu0 %138
        %140 = vrot.lane.b32.xlu0 %v136, 127
        %v141 = vpop.permute.xlu0 %140
        %142 = vrot.lane.b32.xlu0 %v137, 127
        %v143 = vpop.permute.xlu0 %142
        %144 = vrot.lane.b32.xlu0 %v135, 126
        %v145 = vpop.permute.xlu0 %144
        %146 = vrot.lane.b32.xlu0 %v136, 126
        %v147 = vpop.permute.xlu0 %146
        %148 = vrot.lane.b32.xlu0 %v137, 126
        %v149 = vpop.permute.xlu0 %148
        %150 = vrot.lane.b32.xlu0 %v135, 125
        %v151 = vpop.permute.xlu0 %150
        %152 = vrot.lane.b32.xlu0 %v136, 125
        %v153 = vpop.permute.xlu0 %152
        %154 = vrot.lane.b32.xlu0 %v137, 125
        %v155 = vpop.permute.xlu0 %154
        %156 = vrot.lane.b32.xlu0 %v135, 124
        %v157 = vpop.permute.xlu0 %156
        %158 = vrot.lane.b32.xlu0 %v136, 124
        %v159 = vpop.permute.xlu0 %158
        %160 = vrot.lane.b32.xlu0 %v137, 124
        %v161 = vpop.permute.xlu0 %160
        %v162 = vadd.f32 %v135, %v157
        %v163 = vadd.f32 %v136, %v159
        %vm167 = vcmask 1043456
        %v168 = vrot.slane %v135, 4
        %v169 = vrot.slane %v136, 4
        %v170 = vsel %vm167, %v168, %v169
        %v171 = vrot.slane %v137, 4
        %v172 = vsel %vm167, %v169, %v171
        %v175 = vadd.f32 %v162, %v170
        %v176 = vadd.f32 %v163, %v172
        %v180 = vrot.slane %v157, 4
        %v181 = vrot.slane %v159, 4
        %v182 = vsel %vm167, %v180, %v181
        %v183 = vrot.slane %v161, 4
        %v184 = vsel %vm167, %v181, %v183
        %v187 = vadd.f32 %v175, %v182
        %v188 = vadd.f32 %v176, %v184
        %v189 = vmul.f32 %v187, 0.026215928
        %v190 = vmul.f32 %v188, 0.026215928
        %v191 = vadd.f32 %v139, %v151
        %v192 = vadd.f32 %v141, %v153
        %vm193 = vcmask 1046528
        %v194 = vrot.slane %v135, 1
        %v195 = vrot.slane %v136, 1
        %v196 = vsel %vm193, %v194, %v195
        %v197 = vrot.slane %v137, 1
        %v198 = vsel %vm193, %v195, %v197
        %v201 = vadd.f32 %v191, %v196
        %v202 = vadd.f32 %v192, %v198
        %v203 = vrot.slane %v157, 1
        %v204 = vrot.slane %v159, 1
        %v205 = vsel %vm193, %v203, %v204
        %v206 = vrot.slane %v161, 1
        %v207 = vsel %vm193, %v204, %v206
        %v210 = vadd.f32 %v201, %v205
        %v211 = vadd.f32 %v202, %v207
        %vm212 = vcmask 1044480
        %v213 = vrot.slane %v135, 3
        %v214 = vrot.slane %v136, 3
        %v215 = vsel %vm212, %v213, %v214
        %v216 = vrot.slane %v137, 3
        %v217 = vsel %vm212, %v214, %v216
        %v220 = vadd.f32 %v210, %v215
        %v221 = vadd.f32 %v211, %v217
        %v222 = vrot.slane %v157, 3
        %v223 = vrot.slane %v159, 3
        %v224 = vsel %vm212, %v222, %v223
        %v225 = vrot.slane %v161, 3
        %v226 = vsel %vm212, %v223, %v225
        %v229 = vadd.f32 %v220, %v224
        %v230 = vadd.f32 %v221, %v226
        %v234 = vrot.slane %v139, 4
        %v235 = vrot.slane %v141, 4
        %v236 = vsel %vm167, %v234, %v235
        %v237 = vrot.slane %v143, 4
        %v238 = vsel %vm167, %v235, %v237
        %v241 = vadd.f32 %v229, %v236
        %v242 = vadd.f32 %v230, %v238
        %v246 = vrot.slane %v151, 4
        %v247 = vrot.slane %v153, 4
        %v248 = vsel %vm167, %v246, %v247
        %v249 = vrot.slane %v155, 4
        %v250 = vsel %vm167, %v247, %v249
        %v253 = vadd.f32 %v241, %v248
        %v254 = vadd.f32 %v242, %v250
        %v255 = vmul.f32 %v253, 0.04715825
        %v256 = vmul.f32 %v254, 0.04715825
        %v257 = vadd.f32 %v189, %v255
        %v258 = vadd.f32 %v190, %v256
        %vm259 = vcmask 1045504
        %v260 = vrot.slane %v135, 2
        %v261 = vrot.slane %v136, 2
        %v262 = vsel %vm259, %v260, %v261
        %v263 = vrot.slane %v137, 2
        %v264 = vsel %vm259, %v261, %v263
        %v267 = vadd.f32 %v145, %v262
        %v268 = vadd.f32 %v147, %v264
        %v269 = vrot.slane %v157, 2
        %v270 = vrot.slane %v159, 2
        %v271 = vsel %vm259, %v269, %v270
        %v272 = vrot.slane %v161, 2
        %v273 = vsel %vm259, %v270, %v272
        %v276 = vadd.f32 %v267, %v271
        %v277 = vadd.f32 %v268, %v273
        %v281 = vrot.slane %v145, 4
        %v282 = vrot.slane %v147, 4
        %v283 = vsel %vm167, %v281, %v282
        %v284 = vrot.slane %v149, 4
        %v285 = vsel %vm167, %v282, %v284
        %v288 = vadd.f32 %v276, %v283
        %v289 = vadd.f32 %v277, %v285
        %v290 = vmul.f32 %v288, 0.060473338
        %v291 = vmul.f32 %v289, 0.060473338
        %v292 = vadd.f32 %v257, %v290
        %v293 = vadd.f32 %v258, %v291
        %v294 = vadd.f32 %v143, %v155
        %v295 = vrot.slane %v139, 2
        %v296 = vrot.slane %v141, 2
        %v297 = vsel %vm259, %v295, %v296
        %v298 = vrot.slane %v143, 2
        %v299 = vsel %vm259, %v296, %v298
        %v303 = vadd.f32 %v191, %v297
        %v304 = vadd.f32 %v192, %v299
        %v305 = vadd.f32 %v294, %v298
        %v306 = vrot.slane %v151, 2
        %v307 = vrot.slane %v153, 2
        %v308 = vsel %vm259, %v306, %v307
        %v309 = vrot.slane %v155, 2
        %v310 = vsel %vm259, %v307, %v309
        %v314 = vadd.f32 %v303, %v308
        %v315 = vadd.f32 %v304, %v310
        %v316 = vadd.f32 %v305, %v309
        %v317 = vmul.f32 %v314, 0.12017962
        %v318 = vmul.f32 %v315, 0.12017962
        %v319 = vmul.f32 %v316, 0.12017962
        %v323 = vrot.slane %v317, 1
        %v324 = vrot.slane %v318, 1
        %v325 = vsel %vm193, %v323, %v324
        %v326 = vrot.slane %v319, 1
        %v327 = vsel %vm193, %v324, %v326
        %v330 = vadd.f32 %v292, %v325
        %v331 = vadd.f32 %v293, %v327
        %v332 = vrot.slane %v139, 1
        %v333 = vrot.slane %v141, 1
        %v334 = vsel %vm193, %v332, %v333
        %v335 = vrot.slane %v143, 1
        %v336 = vsel %vm193, %v333, %v335
        %v340 = vadd.f32 %v145, %v334
        %v341 = vadd.f32 %v147, %v336
        %v342 = vadd.f32 %v149, %v335
        %v343 = vrot.slane %v151, 1
        %v344 = vrot.slane %v153, 1
        %v345 = vsel %vm193, %v343, %v344
        %v346 = vrot.slane %v155, 1
        %v347 = vsel %vm193, %v344, %v346
        %v351 = vadd.f32 %v340, %v345
        %v352 = vadd.f32 %v341, %v347
        %v353 = vadd.f32 %v342, %v346
        %v354 = vrot.slane %v145, 2
        %v355 = vrot.slane %v147, 2
        %v356 = vsel %vm259, %v354, %v355
        %v357 = vrot.slane %v149, 2
        %v358 = vsel %vm259, %v355, %v357
        %v362 = vadd.f32 %v351, %v356
        %v363 = vadd.f32 %v352, %v358
        %v364 = vadd.f32 %v353, %v357
        %v365 = vmul.f32 %v362, 0.23781766
        %v366 = vmul.f32 %v363, 0.23781766
        %v367 = vmul.f32 %v364, 0.23781766
        %v371 = vrot.slane %v365, 1
        %v372 = vrot.slane %v366, 1
        %v373 = vsel %vm193, %v371, %v372
        %v374 = vrot.slane %v367, 1
        %v375 = vsel %vm193, %v372, %v374
        %v378 = vadd.f32 %v330, %v373
        %v379 = vadd.f32 %v331, %v375
        %v380 = vmul.f32 %v145, 0.8439878
        %v381 = vmul.f32 %v147, 0.8439878
        %v382 = vmul.f32 %v149, 0.8439878
        %v386 = vrot.slane %v380, 2
        %v387 = vrot.slane %v381, 2
        %v388 = vsel %vm259, %v386, %v387
        %v389 = vrot.slane %v382, 2
        %v390 = vsel %vm259, %v387, %v389
        %v393 = vadd.f32 %v378, %v388
        %v394 = vadd.f32 %v379, %v390
        %395 = vst [vmem:[%s134] sm:$0xff] %v393
        %396 = vst [vmem:[%s134 + $0x8] sm:$0xff] %v394
        %s397 = sand.u32 %s52, 1
        %s398 = scalar_lea.sflag [#allocation4], %s397
        %s399 = sand.u32 %s52, 1
        %s400 = smul.addr %s399, 16
        %s401 = scalar_lea.vmem [#allocation5], %s400
        // Predicated region
        $region29: #{tpu_custom_call.1} parent=23 // pred_check
          %p402 = pneg %p62
        $region30: #{tpu_custom_call.1} parent=23 // pred_check_branch
          %404 = sbr.rel (%p402) target = $region32
        $region31: #{tpu_custom_call.1} parent=23 // pred_region
          %s406 = ssub.s32 256, 256
          %407 = vsyncadd %s398, %s406
          %s408 = smul.addr %s18, 2
          %s409 = smul.addr %s408, 128
          %s410 = scalar_lea.hbm %s1, %s409
          %s411 = sshll.u32 %s401, 4
          %s412 = int_to_ptr.vmem [resolvable:$true] %s411
          %417 = dma.vmem_to_hbm [thread:$0]  %s412, 256, %s410, %s398, 128, 128, 8
        $region32: #{tpu_custom_call.1} parent=23 // pred_fallthru
          _
      $region24: #{tpu_custom_call.1} parent=5 // pred_fallthru
        _
      %p418 = scmp.le.s32.totalorder 2, %s13
      // Predicated region
      $region33: #{tpu_custom_call.1} parent=5 // pred_check
        %p419 = pneg %p418
      $region34: #{tpu_custom_call.1} parent=5 // pred_check_branch
        %421 = sbr.rel (%p419) target = $region36
      $region35: #{tpu_custom_call.1} parent=5 // pred_region
        %s422 = ssub.s32 %s13, 2
        // Predicated region
        $region37: #{tpu_custom_call.1} parent=35 // pred_check
          %p423 = pneg %p68
        $region38: #{tpu_custom_call.1} parent=35 // pred_check_branch
          %425 = sbr.rel (%p423) target = $region40
        $region39: #{tpu_custom_call.1} parent=35 // pred_region
          %s426 = sand.u32 %s53, 1
          %s427 = scalar_lea.sflag [#allocation4], %s426
          %s428 = sand.u32 %s53, 1
          %s429 = smul.addr %s428, 16
          %s430 = scalar_lea.vmem [#allocation5], %s429
          %431 = dma.done %s427, 256
        $region40: #{tpu_custom_call.1} parent=35 // pred_fallthru
          _
      $region36: #{tpu_custom_call.1} parent=5 // pred_fallthru
        _
    $region6: #{tpu_custom_call.1} parent=1 // loop_footer
      %s17 = sadd.s32 1, %s13
    $region7: #{tpu_custom_call.1} parent=1 // loop_footer_branch
      %12 = sbr.rel target = $region3
    $region8: #{tpu_custom_call.1} parent=1 // loop_exit
      _
    %432 = vsyncpa [#allocation3], 1
    %s433 = scalar_lea.sflag [#allocation3], 1
    %434 = vsyncpa %s433, 1
    %435 = vsyncpa [#allocation4], 1
    %s436 = scalar_lea.sflag [#allocation4], 1
    %437 = vsyncpa %s436, 1

</llo_original>
